<compile_context>
chip_gen: v6e
topology: v6e:2x2x1
jax: 0.10.0
libtpu: 0.0.40
codegen_flags: <defaults>
</compile_context>

<pallas_src>
import functools

import numpy as np
import jax
import jax.numpy as jnp
from jax.experimental import pallas as pl
from jax.experimental.pallas import tpu as pltpu


_MSE_SUB_ROWS = 64      # row sub-chunk inside an MSE tile (bounds live ranges)
_TILE_P_MAX = 512       # max patch rows per combine-kernel grid step


# ----------------------------------------------------------------------------
# Kernel 1: tiled point-wise squared-error partial sums.
# ----------------------------------------------------------------------------
def _mse_partial_kernel(fct_ref, tgt_ref, out_ref, *, sub_rows):
    tile_rows, lanes = fct_ref.shape

    if tile_rows <= sub_rows or tile_rows % sub_rows != 0:
        d = fct_ref[...] - tgt_ref[...]
        acc = jnp.sum(d * d, axis=0, keepdims=True)                 # (1, lanes)
    else:
        n_sub = tile_rows // sub_rows

        def body(s, acc):
            r = pl.multiple_of(s * sub_rows, sub_rows)
            d = (fct_ref[pl.ds(r, sub_rows), :] -
                 tgt_ref[pl.ds(r, sub_rows), :])
            return acc + jnp.sum(d * d, axis=0, keepdims=True)

        acc = jax.lax.fori_loop(0, n_sub, body,
                                jnp.zeros((1, lanes), jnp.float32),
                                unroll=True)

    # Emit a full lane-dense (8, lanes) block (unmasked stores).  Spreading the
    # partial over the 8 sublanes with an exact /8 keeps the global sum exact.
    out_ref[...] = jnp.broadcast_to(acc * 0.125, (8, lanes))


# ----------------------------------------------------------------------------
# Kernel 2: patch-wise structural statistics + final weighted combination.
# Grid over patch tiles; accumulators persist in SMEM scratch.
# ----------------------------------------------------------------------------
def _combine_kernel(mse_ref, tp_ref, fp_ref, start_ref, len_ref, out_ref,
                    acc_ref, *, mse_weight, w_corr, w_var, w_mean, eps,
                    n_total):
    i = pl.program_id(0)

    @pl.when(i == 0)
    def _():
        acc_ref[0] = 0.0
        acc_ref[1] = 0.0
        out_ref[...] = jnp.zeros_like(out_ref)

    t = tp_ref[...]                                   # (tile_p, T) f32
    f = fp_ref[...]
    start = start_ref[...]                            # (tile_p, 1) int32
    length = len_ref[...]                             # (tile_p, 1) int32

    # In-kernel window mask from the tiny (start, len) table.
    pos = jax.lax.broadcasted_iota(jnp.int32, t.shape, 1)
    m = jnp.logical_and(pos >= start, pos < start + length).astype(jnp.float32)

    n = length.astype(jnp.float32)                    # patch lengths
    valid = (n >= 2.0).astype(jnp.float32)
    n_safe = jnp.maximum(n, 2.0)

    mean_t = jnp.sum(t * m, axis=1, keepdims=True) / n_safe
    mean_f = jnp.sum(f * m, axis=1, keepdims=True) / n_safe

    # Two-pass (centered) second moments: avoids the catastrophic cancellation
    # of the single-pass  E[x^2] - E[x]^2  form for offset-heavy series.
    tc = (t - mean_t) * m
    fc = (f - mean_f) * m
    sxx = jnp.sum(tc * tc, axis=1, keepdims=True)
    syy = jnp.sum(fc * fc, axis=1, keepdims=True)
    sxy = jnp.sum(tc * fc, axis=1, keepdims=True)

    # Pearson correlation (eps in the denominator, like _pearson_correlation).
    corr = sxy / (jnp.sqrt(sxx * syy) + eps)
    corr_loss = 1.0 - jnp.abs(corr)

    # torch.var default is unbiased (divide by n - 1).
    var_t = sxx / (n_safe - 1.0)
    var_f = syy / (n_safe - 1.0)
    var_loss = jnp.abs(var_t - var_f) / (var_t + eps)

    mean_loss = jnp.abs(mean_t - mean_f) / (jnp.abs(mean_t) + eps)

    patch_loss = (w_corr * corr_loss + w_var * var_loss
                  + w_mean * mean_loss) * valid
    acc_ref[0] += jnp.sum(patch_loss)
    acc_ref[1] += jnp.sum(valid)

    @pl.when(i == pl.num_programs(0) - 1)
    def _():
        count = acc_ref[1]
        avg = jnp.where(count > 0.0,
                        acc_ref[0] / jnp.maximum(count, 1.0), 0.0)
        mse = mse_ref[...] / n_total                  # (1, 1)
        total = mse_weight * mse + (1.0 - mse_weight) * avg
        out_ref[...] = jnp.broadcast_to(total, out_ref.shape)


# ----------------------------------------------------------------------------
# Per-generation MSE tile geometry.
# ----------------------------------------------------------------------------
def _mse_tiling(rows, lanes):
    kind = jax.devices()[0].device_kind.lower()
    if "v7" in kind or "tpu7" in kind or "7x" in kind:
        # v7x: ~3.2 TB/s HBM -> larger tiles amortize the ~0.35us step
        # overhead, but only 64 MiB physical VMEM (2 in x 2 bufs x tile).
        target_bytes, vmem_limit = 8 << 20, 48 << 20
    else:
        # v5e / v6e: 2 MiB tiles already sit near the HBM roofline.
        target_bytes, vmem_limit = 2 << 20, 32 << 20

    if rows <= 256:
        return rows, 1, vmem_limit                    # whole slab = one block

    tile_rows = max(_MSE_SUB_ROWS,
                    (target_bytes // (4 * lanes)) // _MSE_SUB_ROWS * _MSE_SUB_ROWS)
    if rows // tile_rows < 2:
        # Always emit >=2 grid steps when there is enough work so the
        # "parallel" axis can be split across TensorCores (v7x megacore).
        tile_rows = max(_MSE_SUB_ROWS,
                        (rows // 2) // _MSE_SUB_ROWS * _MSE_SUB_ROWS)
    num_tiles = max(1, rows // tile_rows)
    return tile_rows, num_tiles, vmem_limit


# ----------------------------------------------------------------------------
# Stage A (jitted): MSE partial sums + device-side FFT amplitudes.
# ----------------------------------------------------------------------------
@functools.partial(
    jax.jit,
    static_argnames=("lanes", "rows", "tile_rows", "num_tiles",
                     "use_pallas_mse", "need_fft", "vmem_limit"))
def _ps_loss_stage_a(forecast, target, *, lanes, rows, tile_rows, num_tiles,
                     use_pallas_mse, need_fft, vmem_limit):
    B, T, F = forecast.shape
    forecast = forecast.astype(jnp.float32)
    target = target.astype(jnp.float32)

    # Contiguous per-series rows (row = b * F + f): used by the device rfft
    # and by the row-level patch gather in stage B (replaces the scalarized
    # per-element gather of the previous version).
    tgt_rows = jnp.transpose(target, (0, 2, 1)).reshape(B * F, T)
    fct_rows = jnp.transpose(forecast, (0, 2, 1)).reshape(B * F, T)

    if need_fft:
        amps = jnp.abs(jnp.fft.rfft(tgt_rows, axis=-1))[:, 1:]   # [B*F, T//2]
    else:
        amps = jnp.zeros((B * F, 1), jnp.float32)

    if use_pallas_mse:
        # Layout-preserving reshape (bitcast) -> no pad, no extra HBM copy.
        fct2d = forecast.reshape(rows, lanes)
        tgt2d = target.reshape(rows, lanes)

        partials = pl.pallas_call(
            functools.partial(_mse_partial_kernel, sub_rows=_MSE_SUB_ROWS),
            out_shape=jax.ShapeDtypeStruct((num_tiles * 8, lanes), jnp.float32),
            grid_spec=pltpu.PrefetchScalarGridSpec(
                num_scalar_prefetch=0,
                grid=(num_tiles,),
                in_specs=[pl.BlockSpec((tile_rows, lanes), lambda i: (i, 0)),
                          pl.BlockSpec((tile_rows, lanes), lambda i: (i, 0))],
                out_specs=pl.BlockSpec((8, lanes), lambda i: (i, 0))),
            compiler_params=pltpu.CompilerParams(
                dimension_semantics=("parallel",),
                vmem_limit_bytes=vmem_limit),
        )(fct2d, tgt2d)
        mse_sum = jnp.sum(partials)

        bulk_rows = num_tiles * tile_rows
        if bulk_rows < rows:
            # Small row tail (< one tile): reduce it directly with jnp instead
            # of padding the whole input to a tile multiple.
            dt = fct2d[bulk_rows:] - tgt2d[bulk_rows:]
            mse_sum = mse_sum + jnp.sum(dt * dt)
    else:
        # TODO(synk): when numel % 128 != 0 a lane-dense slab would require a
        # full-copy pad; fall back to a plain XLA reduce for the MSE term.
        d = forecast - target
        mse_sum = jnp.sum(d * d)

    return mse_sum.reshape(1, 1), amps, tgt_rows, fct_rows


# ----------------------------------------------------------------------------
# Stage B (jitted): row gather of patch windows + combine kernel.
# ----------------------------------------------------------------------------
@functools.partial(
    jax.jit,
    static_argnames=("tile_p", "mse_weight", "w_corr", "w_var", "w_mean",
                     "eps", "n_total"))
def _ps_loss_stage_b(mse_sum, tgt_rows, fct_rows, row_ids, starts, lengths, *,
                     tile_p, mse_weight, w_corr, w_var, w_mean, eps, n_total):
    T = tgt_rows.shape[1]
    Pp = row_ids.shape[0]

    # Row-level gather: one contiguous [T] row per patch (DMA-friendly); the
    # [start, start+len) window is applied in-kernel via iota masks.
    tp = jnp.take(tgt_rows, row_ids, axis=0)                      # [Pp, T]
    fp = jnp.take(fct_rows, row_ids, axis=0)

    kern = functools.partial(
        _combine_kernel, mse_weight=mse_weight, w_corr=w_corr, w_var=w_var,
        w_mean=w_mean, eps=eps, n_total=n_total)

    out = pl.pallas_call(
        kern,
        out_shape=jax.ShapeDtypeStruct((8, 128), jnp.float32),
        grid_spec=pltpu.PrefetchScalarGridSpec(
            num_scalar_prefetch=0,
            grid=(Pp // tile_p,),
            in_specs=[
                pl.BlockSpec((1, 1), lambda i: (0, 0)),           # mse_sum
                pl.BlockSpec((tile_p, T), lambda i: (i, 0)),      # target rows
                pl.BlockSpec((tile_p, T), lambda i: (i, 0)),      # forecast rows
                pl.BlockSpec((tile_p, 1), lambda i: (i, 0)),      # starts
                pl.BlockSpec((tile_p, 1), lambda i: (i, 0)),      # lengths
            ],
            out_specs=pl.BlockSpec((8, 128), lambda i: (0, 0)),
            scratch_shapes=[pltpu.SMEM((2,), jnp.float32)]),
        compiler_params=pltpu.CompilerParams(
            dimension_semantics=("arbitrary",)),
    )(mse_sum, tp, fp, starts, lengths)
    return out[0, 0]


# ----------------------------------------------------------------------------
# Host-side: period/segment enumeration from the dominant frequencies.
# Mirrors PSLoss._fourier_adaptive_patching given the top-k absolute indices.
# ----------------------------------------------------------------------------
# TODO(synk): the set-dedup segment enumeration has a data-dependent number of
# patches; it stays on the host (only the tiny [B*F, T//2] amplitude array
# crosses the device->host boundary).
def _segments_from_top_freqs(seq_len, top_abs_freqs, min_patch_len):
    patch_indices = []
    processed = set()
    for fa in top_abs_freqs:
        period_len = int(np.floor(seq_len / float(fa)))
        if period_len < min_patch_len or period_len in processed:
            continue
        processed.add(period_len)
        num_segments = seq_len // period_len
        if num_segments == 0:
            continue
        for seg_idx in range(num_segments):
            s = seg_idx * period_len
            e = (seg_idx + 1) * period_len
            if e - s >= min_patch_len:
                patch_indices.append((s, e))
        remaining_start = num_segments * period_len
        if seq_len - remaining_start >= min_patch_len:
            patch_indices.append((remaining_start, seq_len))
    if not patch_indices and seq_len >= min_patch_len:
        patch_indices.append((0, seq_len))
    return list(set(patch_indices))


# ----------------------------------------------------------------------------
# Wrapper: PSLoss forward (fixed-weight path of the reference module).
# ----------------------------------------------------------------------------
def ps_loss(forecast, target, *, mse_weight=0.5, w_corr=1.0, w_var=1.0,
            w_mean=1.0, k_dominant_freqs=3, min_patch_len=5, eps=1e-8):
    forecast = jnp.asarray(forecast, jnp.float32)
    target = jnp.asarray(target, jnp.float32)
    B, T, F = forecast.shape
    min_patch_len = max(2, min_patch_len)
    N = B * T * F

    # ---- static MSE slab geometry (free reshape, no pad / input copy) -------
    lanes = next((c for c in (1024, 512, 256, 128) if N % c == 0), 0)
    use_pallas_mse = lanes > 0
    if use_pallas_mse:
        rows = N // lanes
        tile_rows, num_tiles, vmem_limit = _mse_tiling(rows, lanes)
    else:
        lanes, rows, tile_rows, num_tiles, vmem_limit = 128, 1, 1, 1, 32 << 20

    need_fft = (T >= min_patch_len * 2) and (T // 2 >= 1) and (k_dominant_freqs > 0)

    mse_sum, amps, tgt_rows, fct_rows = _ps_loss_stage_a(
        forecast, target, lanes=lanes, rows=rows, tile_rows=tile_rows,
        num_tiles=num_tiles, use_pallas_mse=use_pallas_mse, need_fft=need_fft,
        vmem_limit=vmem_limit)

    # ---- host: Fourier-adaptive patch enumeration ---------------------------
    BF = B * F
    patch_rows, patch_starts, patch_lens = [], [], []
    if need_fft:
        amps_np = np.asarray(jax.device_get(amps))
        k = min(int(k_dominant_freqs), amps_np.shape[1])
        top_abs = np.argsort(-amps_np, axis=-1, kind="stable")[:, :k] + 1
        for r in range(BF):
            for (s, e) in _segments_from_top_freqs(T, top_abs[r], min_patch_len):
                if e - s >= 2:
                    patch_rows.append(r)
                    patch_starts.append(s)
                    patch_lens.append(e - s)
    else:
        if T >= min_patch_len and T >= 2:
            for r in range(BF):
                patch_rows.append(r)
                patch_starts.append(0)
                patch_lens.append(T)

    # ---- tiny (row, start, len) table; patch count bucketed to pow2 ---------
    P = len(patch_rows)
    Pp = 8 if P <= 8 else 1 << (P - 1).bit_length()
    row_ids = np.zeros((Pp,), np.int32)
    starts = np.zeros((Pp, 1), np.int32)
    lens_ = np.zeros((Pp, 1), np.int32)
    if P:
        row_ids[:P] = np.asarray(patch_rows, np.int32)
        starts[:P, 0] = np.asarray(patch_starts, np.int32)
        lens_[:P, 0] = np.asarray(patch_lens, np.int32)
    tile_p = min(Pp, _TILE_P_MAX)

    return _ps_loss_stage_b(
        mse_sum, tgt_rows, fct_rows,
        jnp.asarray(row_ids), jnp.asarray(starts), jnp.asarray(lens_),
        tile_p=tile_p, mse_weight=float(mse_weight), w_corr=float(w_corr),
        w_var=float(w_var), w_mean=float(w_mean), eps=float(eps),
        n_total=float(N))


# ----------------------------------------------------------------------------
# Pure-numpy reference (mirrors the PyTorch forward) for a sanity check.
# ----------------------------------------------------------------------------
def _fourier_adaptive_patching(series, k_dominant_freqs, min_patch_len):
    seq_len = series.shape[0]
    patch_indices = []
    if seq_len < min_patch_len * 2:
        if seq_len >= min_patch_len:
            patch_indices.append((0, seq_len))
        return patch_indices
    xf = np.fft.rfft(series.astype(np.float64))
    amplitudes = np.abs(xf)
    if amplitudes.shape[0] <= 1:
        if seq_len >= min_patch_len:
            patch_indices.append((0, seq_len))
        return patch_indices
    actual = amplitudes[1:]
    if actual.shape[0] == 0:
        if seq_len >= min_patch_len:
            patch_indices.append((0, seq_len))
        return patch_indices
    num_to_select = min(k_dominant_freqs, actual.shape[0])
    if num_to_select == 0:
        if seq_len >= min_patch_len:
            patch_indices.append((0, seq_len))
        return patch_indices
    top_abs = np.argsort(-actual, kind="stable")[:num_to_select] + 1
    return _segments_from_top_freqs(seq_len, top_abs, min_patch_len)


def _ps_loss_ref(forecast, target, *, mse_weight=0.5, w_corr=1.0, w_var=1.0,
                 w_mean=1.0, k_dominant_freqs=3, min_patch_len=5, eps=1e-8):
    fct = np.asarray(forecast, np.float64)
    tgt = np.asarray(target, np.float64)
    B, T, F = fct.shape
    min_patch_len = max(2, min_patch_len)
    mse = np.mean((fct - tgt) ** 2)
    total, count = 0.0, 0
    for b in range(B):
        for f in range(F):
            ts, fs = tgt[b, :, f], fct[b, :, f]
            for (s, e) in _fourier_adaptive_patching(ts, k_dominant_freqs, min_patch_len):
                if e - s < 2:
                    continue
                tpch, fpch = ts[s:e], fs[s:e]
                tm, fm = tpch.mean(), fpch.mean()
                num = np.sum((tpch - tm) * (fpch - fm))
                den = np.sqrt(np.sum((tpch - tm) ** 2) * np.sum((fpch - fm) ** 2)) + eps
                corr_loss = 1.0 - abs(num / den)
                tv = np.var(tpch, ddof=1)
                fv = np.var(fpch, ddof=1)
                var_loss = abs(tv - fv) / (tv + eps)
                mean_loss = abs(tm - fm) / (abs(tm) + eps)
                total += w_corr * corr_loss + w_var * var_loss + w_mean * mean_loss
                count += 1
    avg = total / count if count > 0 else 0.0
    return mse_weight * mse + (1.0 - mse_weight) * avg


if __name__ == "__main__":
    key = jax.random.PRNGKey(0)
    k1, k2 = jax.random.split(key)
    B, T, F = 2, 16, 4            # [batch, time, features]
    forecast = jax.random.normal(k1, (B, T, F), dtype=jnp.float32)
    target = jax.random.normal(k2, (B, T, F), dtype=jnp.float32)

    loss = ps_loss(forecast, target)
    loss = jax.block_until_ready(loss)

    ref = _ps_loss_ref(np.asarray(forecast), np.asarray(target))
    assert np.isfinite(float(loss))
    np.testing.assert_allclose(float(loss), float(ref), rtol=1e-4, atol=1e-5)
    print("KERNEL_OK")
</pallas_src>

<mosaic_0001>
module attributes {stable_mosaic.version = 11 : i64} {
  func.func @_mse_partial_kernel(%arg0: i32, %arg1: memref<1x128xf32, #tpu.memory_space<vmem>>, %arg2: memref<1x128xf32, #tpu.memory_space<vmem>>, %arg3: memref<8x128xf32, #tpu.memory_space<vmem>>) attributes {dimension_semantics = [#tpu.dimension_semantics<parallel>], iteration_bounds = array<i64: 1>, scalar_prefetch = 0 : i64, scratch_operands = 0 : i64, tpu.core_type = #tpu.core_type<tc>, window_params = [{transform_indices = @transform_0, window_bounds = array<i64: 1, 128>}, {transform_indices = @transform_1, window_bounds = array<i64: 1, 128>}, {transform_indices = @transform_2, window_bounds = array<i64: 8, 128>}]} {
    %c0 = arith.constant 0 : index
    %c0_0 = arith.constant 0 : index
    %0 = vector.load %arg1[%c0, %c0_0] : memref<1x128xf32, #tpu.memory_space<vmem>>, vector<1x128xf32>
    %c0_1 = arith.constant 0 : index
    %c0_2 = arith.constant 0 : index
    %1 = vector.load %arg2[%c0_1, %c0_2] : memref<1x128xf32, #tpu.memory_space<vmem>>, vector<1x128xf32>
    %2 = arith.subf %0, %1 : vector<1x128xf32>
    %3 = arith.mulf %2, %2 : vector<1x128xf32>
    %cst = arith.constant dense<0.000000e+00> : vector<128xf32>
    %4 = vector.multi_reduction <add>, %3, %cst [0] : vector<1x128xf32> to vector<128xf32>
    %5 = vector.shape_cast %4 : vector<128xf32> to vector<1x128xf32>
    %cst_3 = arith.constant 1.250000e-01 : f32
    %6 = vector.broadcast %cst_3 : f32 to vector<1x128xf32>
    %7 = arith.mulf %5, %6 : vector<1x128xf32>
    %8 = vector.shape_cast %7 : vector<1x128xf32> to vector<1x128xf32>
    %9 = vector.broadcast %8 : vector<1x128xf32> to vector<8x128xf32>
    %c0_4 = arith.constant 0 : index
    %c0_5 = arith.constant 0 : index
    %10 = vector.load %arg3[%c0_4, %c0_5] : memref<8x128xf32, #tpu.memory_space<vmem>>, vector<8x128xf32>
    tpu.vector_store %arg3[%c0_4, %c0_5], %9 {strides = array<i32>} : memref<8x128xf32, #tpu.memory_space<vmem>>, vector<8x128xf32>,
    return
  }
  func.func @transform_0(%arg0: i32) -> (i32, i32) {
    %c0_i32 = arith.constant 0 : i32
    %c0_i32_0 = arith.constant 0 : i32
    return %arg0, %c0_i32 : i32, i32
  }
  func.func @transform_1(%arg0: i32) -> (i32, i32) {
    %c0_i32 = arith.constant 0 : i32
    %c0_i32_0 = arith.constant 0 : i32
    return %arg0, %c0_i32 : i32, i32
  }
  func.func @transform_2(%arg0: i32) -> (i32, i32) {
    %c0_i32 = arith.constant 0 : i32
    %c0_i32_0 = arith.constant 0 : i32
    return %arg0, %c0_i32 : i32, i32
  }
}

</mosaic_0001>

<llo_original>
// kernel: _ps_loss_stage_a.1
$region0: #{_ps_loss_stage_a.1}
  #allocation0 [shape = 'u32[]', space=smem, size = 0x4, offset = 0x4, fixed_abs, tag = 'smem constant byte address 0x4 - core index']
  #allocation1 [shape = 'u32[144,128]{1,0:T(1,128)}', space=vmem, size = 0x12000, scoped, tag = 'internal scratch']
  %s0 = inlined_call_operand.vmem [shape: f32[1,128], index: 0, kind: input, shape index: {}]
  %s1 = inlined_call_operand.vmem [shape: f32[1,128], index: 1, kind: input, shape index: {}]
  %s2 = inlined_call_operand.vmem [shape: f32[8,128], index: 2, kind: output, shape index: {}]
  %s3 = sld [smem:[#allocation0]]
  $region18: #{_ps_loss_stage_a.1} parent=0
    _
  %s5 = ssub.s32 1, %s3
  %s6 = scalar_select 0, %s5, %s3
  // Predicated region
  $region2: #{_ps_loss_stage_a.1} parent=0 // pred_check
    _
  $region3: #{_ps_loss_stage_a.1} parent=0 // pred_check_branch
    %8 = sbr.rel (0) target = $region5
  $region4: #{_ps_loss_stage_a.1} parent=0 // pred_region
    _
  $region5: #{_ps_loss_stage_a.1} parent=0 // pred_fallthru
    _
  // Predicated region
  $region6: #{_ps_loss_stage_a.1} parent=0 // pred_check
    _
  $region7: #{_ps_loss_stage_a.1} parent=0 // pred_check_branch
    %10 = sbr.rel (0) target = $region9
  $region8: #{_ps_loss_stage_a.1} parent=0 // pred_region
    _
  $region9: #{_ps_loss_stage_a.1} parent=0 // pred_fallthru
    _
  %v11 = vld [vmem:[%s0] sm:$0x1]
  %v12 = vld [vmem:[%s1] sm:$0x1]
  %v13 = vsub.f32 %v11, %v12
  %v14 = vmul.f32 %v13, %v13
  %v15 = vadd.f32 %v14, 0.0
  %v16 = vmul.f32 %v15, 0.125
  %v18 = vlaneseq
  %v19 = vshrl.u32 %v18, 7
  %v20 = vsub.s32 0, %v19
  %v21 = vrot.slane %v16, %v20
  %23 = vst [vmem:[%s2] sm:$0xff] %v21
  // Predicated region
  $region10: #{_ps_loss_stage_a.1} parent=0 // pred_check
    _
  $region11: #{_ps_loss_stage_a.1} parent=0 // pred_check_branch
    %25 = sbr.rel (0) target = $region13
  $region12: #{_ps_loss_stage_a.1} parent=0 // pred_region
    _
  $region13: #{_ps_loss_stage_a.1} parent=0 // pred_fallthru
    _
  // Predicated region
  $region14: #{_ps_loss_stage_a.1} parent=0 // pred_check
    _
  $region15: #{_ps_loss_stage_a.1} parent=0 // pred_check_branch
    %27 = sbr.rel (0) target = $region17
  $region16: #{_ps_loss_stage_a.1} parent=0 // pred_region
    _
  $region17: #{_ps_loss_stage_a.1} parent=0 // pred_fallthru
    _

</llo_original>
